<compile_context>
chip_gen: v5e
topology: v5e:2x2
jax: 0.10.0
libtpu: 0.0.40
codegen_flags: <defaults>
</compile_context>

<pallas_src>
import functools

import jax
import jax.numpy as jnp
from jax.experimental import pallas as pl
from jax.experimental.pallas import tpu as pltpu

_TARGET_BLOCK_BYTES = 4 << 20   # ~4 MiB streamed blocks (v6e/v7x sweet spot)
_VMEM_LIMIT_BYTES = 48 << 20    # > v5e's 16 MiB scoped default, < v7x 64 MiB phys.


# ---------------------------------------------------------------------------
# Kernels
# ---------------------------------------------------------------------------
def _nmode_kernel(p_ref, g_ref, out_ref):
    # Compute in f32 (v5e VPU/EUP have no native bf16); narrow only at store.
    p = p_ref[...].astype(jnp.float32)
    g = g_ref[...].astype(jnp.float32)   # (tile_r, tile_c) or (1, tile_c)
    s = jnp.sin(p + g)                   # gamma broadcasts over rows if (1, tc)
    out_ref[...] = (s * s - p).astype(out_ref.dtype)


def _euler_kernel(p_ref, g_ref, out_ref, *, dt, n_substeps):
    # k fused explicit-Euler sub-steps on the VMEM-resident block:
    # one HBM read + one HBM write of p per *k* sub-steps.
    p = p_ref[...].astype(jnp.float32)
    g = g_ref[...].astype(jnp.float32)

    def body(_, p):
        s = jnp.sin(p + g)
        return p + dt * (s * s - p)

    p = jax.lax.fori_loop(0, n_substeps, body, p, unroll=True)
    out_ref[...] = p.astype(out_ref.dtype)


# ---------------------------------------------------------------------------
# Layout helpers
# ---------------------------------------------------------------------------
def _flatten_2d(x):
    """Free view-reshape to 2-D (merge leading dims)."""
    if x.ndim == 0:
        return x.reshape(1, 1)
    if x.ndim == 1:
        return x.reshape(1, x.shape[0])
    return x.reshape(-1, x.shape[-1])


def _choose_tiles(R, C, itemsize):
    """Pick (tile_r, tile_c) targeting ~4 MiB blocks; keep blocks legal
    ((8,128)-divisible or full-extent) and the grid >= 2 steps when possible
    so v7x's two TensorCores both stream."""
    # Lane (last-dim) tile: whole rows in one block unless they are huge.
    if C > 2048 and C % 128 == 0:
        tile_c = 2048
    elif C > 8192:                       # huge ragged rows: mask the boundary
        tile_c = 2048
    else:
        tile_c = C                       # == full array dim -> always legal
    grid_c = -(-C // tile_c)

    # Sublane (row) tile, sized by the per-block byte budget.
    row_bytes = max(1, tile_c * itemsize)
    max_rows = max(8, (_TARGET_BLOCK_BYTES // row_bytes) // 8 * 8)
    if R <= 8:
        tile_r = R                       # == full array dim -> legal
    else:
        tile_r = max(8, min(max_rows, (R // 8) * 8))
        # Ensure >= 2 grid steps (megacore sharding on v7x) when feasible.
        if grid_c == 1 and tile_r >= R and R >= 16:
            tile_r = max(8, ((-(-R // 2) + 7) // 8) * 8)
    return tile_r, tile_c


def _gamma_layout(gamma, p, R, C):
    """Lay gamma out without a full-size HBM broadcast when avoidable.

    Returns (g2, g_is_row) where g_is_row means g2 has shape (1, C) and is
    kept VMEM-resident across all row tiles.
    """
    if gamma.shape == p.shape:
        return gamma.reshape(R, C), False
    lead = gamma.shape[:-1] if gamma.ndim >= 1 else ()
    row_only = all(d == 1 for d in lead) and (
        gamma.ndim == 0 or gamma.shape[-1] in (1, C))
    if row_only:
        return jnp.broadcast_to(jnp.reshape(gamma, (1, -1)), (1, C)), True
    # General broadcast pattern (e.g. per-row gamma): materialize (rare).
    # TODO(synk): add a (tile_r, 1) column-resident path if this shows up.
    return jnp.broadcast_to(gamma, p.shape).reshape(R, C), False


def _run(kernel, p, gamma):
    p = jnp.asarray(p)
    gamma = jnp.asarray(gamma)
    out_dtype = jnp.result_type(p.dtype, gamma.dtype)   # match torch promotion

    out_shape = jnp.broadcast_shapes(p.shape, gamma.shape)
    if out_shape != p.shape:
        # Reference broadcasts the output up if gamma has extra axes (rare).
        p = jnp.broadcast_to(p, out_shape)

    p2 = _flatten_2d(p)
    R, C = p2.shape
    g2, g_is_row = _gamma_layout(gamma, p, R, C)

    itemsize = max(jnp.dtype(p2.dtype).itemsize,
                   jnp.dtype(g2.dtype).itemsize,
                   jnp.dtype(out_dtype).itemsize)
    tile_r, tile_c = _choose_tiles(R, C, itemsize)
    grid = (pl.cdiv(R, tile_r), pl.cdiv(C, tile_c))

    p_spec = pl.BlockSpec((tile_r, tile_c), lambda i, j: (i, j))
    g_spec = (pl.BlockSpec((1, tile_c), lambda i, j: (0, j))
              if g_is_row else p_spec)

    out = pl.pallas_call(
        kernel,
        out_shape=jax.ShapeDtypeStruct((R, C), out_dtype),
        grid=grid,
        in_specs=[p_spec, g_spec],
        out_specs=p_spec,
        compiler_params=pltpu.CompilerParams(
            dimension_semantics=("parallel", "parallel"),
            vmem_limit_bytes=_VMEM_LIMIT_BYTES,
        ),
    )(p2, g2)

    return out.reshape(out_shape)


# ---------------------------------------------------------------------------
# Public API
# ---------------------------------------------------------------------------
def nmode_forward(t, p, gamma):
    """Pallas equivalent of nmODE.forward(t, p) with self.gamma == gamma.

    `t` is accepted for ODE-solver API parity but does not enter dpdt.
    `gamma` may be any shape broadcastable to `p` (as in the PyTorch module).
    """
    del t
    return _run(_nmode_kernel, p, gamma)


def nmode_euler_step(p, gamma, dt, n_substeps=1):
    """Fused explicit-Euler update: `n_substeps` applications of
    p <- p + dt * (-p + sin(p + gamma)^2) with a single HBM read/write of p."""
    kern = functools.partial(_euler_kernel, dt=float(dt),
                             n_substeps=int(n_substeps))
    return _run(kern, p, gamma)


def nmode_reference(t, p, gamma):
    del t
    return -p + jnp.sin(p + gamma) ** 2


# ---------------------------------------------------------------------------
# Demo / self-test
# ---------------------------------------------------------------------------
if __name__ == "__main__":
    # TODO(synk): self.nfe (host-side Python call counter) has no tensor-op
    # equivalent; track it in the calling solver if needed.
    key = jax.random.PRNGKey(0)
    kp, kg, kp2, kg2 = jax.random.split(key, 4)
    t = jnp.float32(0.0)

    # Small demo shape consistent with the module.
    batch, hidden = 2, 32
    p = jax.random.normal(kp, (batch, hidden), dtype=jnp.float32)
    gamma = jax.random.normal(kg, (batch, hidden), dtype=jnp.float32)
    out = jax.block_until_ready(nmode_forward(t, p, gamma))
    ref = nmode_reference(t, p, gamma)
    assert out.shape == ref.shape and out.dtype == ref.dtype
    assert jnp.allclose(out, ref, atol=1e-5, rtol=1e-5), "forward mismatch"

    # Ragged shape + row-broadcast gamma: exercises the no-pad path and the
    # VMEM-resident (1, C) gamma path (no HBM-materialized broadcast).
    p_big = jax.random.normal(kp2, (300, 1000), dtype=jnp.float32)
    gamma_row = jax.random.normal(kg2, (1, 1000), dtype=jnp.float32)
    out_big = jax.block_until_ready(nmode_forward(t, p_big, gamma_row))
    ref_big = nmode_reference(t, p_big, gamma_row)
    assert out_big.shape == ref_big.shape
    assert jnp.allclose(out_big, ref_big, atol=1e-5, rtol=1e-5), "tiled mismatch"

    # Mixed dtypes: output follows promotion (bf16 p, f32 gamma -> f32).
    p_bf16 = p.astype(jnp.bfloat16)
    out_mix = jax.block_until_ready(nmode_forward(t, p_bf16, gamma))
    ref_mix = nmode_reference(t, p_bf16.astype(jnp.float32), gamma)
    assert out_mix.dtype == jnp.float32
    assert jnp.allclose(out_mix, ref_mix, atol=5e-3, rtol=5e-3), "dtype mismatch"

    # Fused multi-substep Euler (solver-loop lever): 4 sub-steps, 1 HBM trip.
    dt, k = 0.1, 4
    out_euler = jax.block_until_ready(nmode_euler_step(p, gamma, dt, n_substeps=k))
    ref_euler = p
    for _ in range(k):
        ref_euler = ref_euler + dt * nmode_reference(t, ref_euler, gamma)
    assert jnp.allclose(out_euler, ref_euler, atol=1e-5, rtol=1e-5), "euler mismatch"

    print("KERNEL_OK")
</pallas_src>

<mosaic_0001>
module attributes {stable_mosaic.version = 11 : i64} {
  func.func @_nmode_kernel(%arg0: i32, %arg1: i32, %arg2: memref<2x32xf32, #tpu.memory_space<vmem>>, %arg3: memref<2x32xf32, #tpu.memory_space<vmem>>, %arg4: memref<2x32xf32, #tpu.memory_space<vmem>>) attributes {dimension_semantics = [#tpu.dimension_semantics<parallel>, #tpu.dimension_semantics<parallel>], iteration_bounds = array<i64: 1, 1>, scalar_prefetch = 0 : i64, scratch_operands = 0 : i64, tpu.core_type = #tpu.core_type<tc>, window_params = [{transform_indices = @transform_0, window_bounds = array<i64: 2, 32>}, {transform_indices = @transform_1, window_bounds = array<i64: 2, 32>}, {transform_indices = @transform_2, window_bounds = array<i64: 2, 32>}]} {
    %c0 = arith.constant 0 : index
    %c0_0 = arith.constant 0 : index
    %0 = vector.load %arg2[%c0, %c0_0] : memref<2x32xf32, #tpu.memory_space<vmem>>, vector<2x32xf32>
    %c0_1 = arith.constant 0 : index
    %c0_2 = arith.constant 0 : index
    %1 = vector.load %arg3[%c0_1, %c0_2] : memref<2x32xf32, #tpu.memory_space<vmem>>, vector<2x32xf32>
    %2 = arith.addf %0, %1 : vector<2x32xf32>
    %3 = math.sin %2 : vector<2x32xf32>
    %4 = arith.mulf %3, %3 : vector<2x32xf32>
    %5 = arith.subf %4, %0 : vector<2x32xf32>
    %c0_3 = arith.constant 0 : index
    %c0_4 = arith.constant 0 : index
    %6 = vector.load %arg4[%c0_3, %c0_4] : memref<2x32xf32, #tpu.memory_space<vmem>>, vector<2x32xf32>
    tpu.vector_store %arg4[%c0_3, %c0_4], %5 {strides = array<i32>} : memref<2x32xf32, #tpu.memory_space<vmem>>, vector<2x32xf32>,
    return
  }
  func.func @transform_0(%arg0: i32, %arg1: i32) -> (i32, i32) {
    %c0_i32 = arith.constant 0 : i32
    return %arg0, %arg1 : i32, i32
  }
  func.func @transform_1(%arg0: i32, %arg1: i32) -> (i32, i32) {
    %c0_i32 = arith.constant 0 : i32
    return %arg0, %arg1 : i32, i32
  }
  func.func @transform_2(%arg0: i32, %arg1: i32) -> (i32, i32) {
    %c0_i32 = arith.constant 0 : i32
    return %arg0, %arg1 : i32, i32
  }
}

</mosaic_0001>

<llo_original>
// kernel: tpu_custom_call.1
$region0: #{tpu_custom_call.1}
  #allocation0 [shape = 'u32[]', space=smem, size = 0x4, offset = 0x4, fixed_abs, tag = 'smem constant byte address 0x4 - core index']
  #allocation1 [shape = 'u32[72,128]{1,0:T(1,128)}', space=vmem, size = 0x9000, scoped, tag = 'internal scratch']
  %s0 = inlined_call_operand.hbm [shape: f32[2,32], index: 0, kind: input, shape index: {}]
  %s1 = inlined_call_operand.hbm [shape: f32[2,32], index: 1, kind: input, shape index: {}]
  %s2 = inlined_call_operand.hbm [shape: f32[2,32], index: 2, kind: output, shape index: {}]
  %s3 = sld [smem:[#allocation0]]
  $region26: #{tpu_custom_call.1} parent=0
    _
  %s5 = ssub.s32 1, %s3
  %s6 = scalar_select 0, %s5, %s3
  $region1: #{tpu_custom_call.1} parent=0
    #allocation2 [shape = 'u8[1024]{0}', space=vmem, size = 0x400, scoped, tag = 'input window, operand 0, single buffered']
    #allocation3 [shape = 's32[1]{0}', space=sflag, size = 0x4, scoped, tag = 'scoped memory for tpu_custom_call.1']
    #allocation4 [shape = 's32[1]{0}', space=sflag, size = 0x4, scoped, tag = 'scoped memory for tpu_custom_call.1']
    #allocation5 [shape = 'u8[1024]{0}', space=vmem, size = 0x400, scoped, tag = 'input window, operand 1, single buffered']
    #allocation6 [shape = 's32[1]{0}', space=sflag, size = 0x4, scoped, tag = 'scoped memory for tpu_custom_call.1']
    #allocation7 [shape = 'u8[1024]{0}', space=vmem, size = 0x400, scoped, tag = 'output window, operand 0, single buffered']
    %7 = vsyncpa [#allocation3], 0
    %8 = vsyncpa [#allocation6], 0
    %9 = vsyncpa [#allocation4], 0
    // Predicated region
    $region2: #{tpu_custom_call.1} parent=1 // pred_check
      _
    $region3: #{tpu_custom_call.1} parent=1 // pred_check_branch
      %11 = sbr.rel (0) target = $region5
    $region4: #{tpu_custom_call.1} parent=1 // pred_region
      %13 = vsyncadd [#allocation3], 0
      %s15 = sshll.u32 %s0, 4
      %s16 = int_to_ptr.hbm [resolvable:$true] %s15
      %s17 = sshll.u32 [#allocation2], 4
      %s18 = int_to_ptr.vmem [resolvable:$true] %s17
      %20 = dma.hbm_to_vmem [thread:$0]  %s16, 32, %s18, [#allocation3]
    $region5: #{tpu_custom_call.1} parent=1 // pred_fallthru
      _
    // Predicated region
    $region6: #{tpu_custom_call.1} parent=1 // pred_check
      _
    $region7: #{tpu_custom_call.1} parent=1 // pred_check_branch
      %22 = sbr.rel (0) target = $region9
    $region8: #{tpu_custom_call.1} parent=1 // pred_region
      %24 = vsyncadd [#allocation6], 0
      %s26 = sshll.u32 %s1, 4
      %s27 = int_to_ptr.hbm [resolvable:$true] %s26
      %s28 = sshll.u32 [#allocation5], 4
      %s29 = int_to_ptr.vmem [resolvable:$true] %s28
      %31 = dma.hbm_to_vmem [thread:$0]  %s27, 32, %s29, [#allocation6]
    $region9: #{tpu_custom_call.1} parent=1 // pred_fallthru
      _
    // Predicated region
    $region10: #{tpu_custom_call.1} parent=1 // pred_check
      _
    $region11: #{tpu_custom_call.1} parent=1 // pred_check_branch
      %33 = sbr.rel (0) target = $region13
    $region12: #{tpu_custom_call.1} parent=1 // pred_region
      %35 = dma.done [#allocation3], 32
    $region13: #{tpu_custom_call.1} parent=1 // pred_fallthru
      _
    // Predicated region
    $region14: #{tpu_custom_call.1} parent=1 // pred_check
      _
    $region15: #{tpu_custom_call.1} parent=1 // pred_check_branch
      %37 = sbr.rel (0) target = $region17
    $region16: #{tpu_custom_call.1} parent=1 // pred_region
      %39 = dma.done [#allocation6], 32
    $region17: #{tpu_custom_call.1} parent=1 // pred_fallthru
      _
    %v40 = vld [vmem:[#allocation2] sm:$0x3]
    %v41 = vld [vmem:[#allocation5] sm:$0x3]
    %v42 = vadd.f32 %v40, %v41
    %v43 = vand.u32 2147483647, %v42
    %vm44 = vcmp.le.f32.partialorder %v43, 0.7853982
    %vm45 = vcmp.lt.s32.totalorder %v42, 0
    %v46 = vand.u32 %v42, 2139095040
    %v47 = vshrl.u32 %v46, 23
    %v48 = vsub.s32 %v47, 127
    %v49 = vand.u32 2147483647, %v42
    %v50 = vand.u32 %v49, 8388607
    %v51 = vor.u32 %v50, 8388608
    %v52 = vsub.s32 0, %v51
    %v53 = vadd.s32 %v48, 1
    %vm54 = vcmp.gt.s32.totalorder %v53, 0
    %v55 = vsel %vm54, %v53, 0
    %v56 = vshrl.u32 %v55, 5
    %v57 = vand.u32 %v55, 31
    %v58 = vsub.s32 32, %v57
    %v59 = vshrl.u32 683565275, %v58
    %v60 = vshll.u32 683565275, %v57
    %v61 = vshrl.u32 2475754826, %v58
    %v62 = vor.u32 %v60, %v61
    %v63 = vshll.u32 2475754826, %v57
    %v64 = vshrl.u32 2131351028, %v58
    %v65 = vor.u32 %v63, %v64
    %v66 = vshll.u32 2131351028, %v57
    %v67 = vshrl.u32 2102212464, %v58
    %v68 = vor.u32 %v66, %v67
    %v69 = vshll.u32 2102212464, %v57
    %v70 = vshrl.u32 920167782, %v58
    %v71 = vor.u32 %v69, %v70
    %v72 = vshll.u32 920167782, %v57
    %v73 = vshrl.u32 1326507024, %v58
    %v74 = vor.u32 %v72, %v73
    %vm75 = vcmp.lt.s32.totalorder %v56, 1
    %vm76 = vcmp.lt.s32.totalorder %v56, 2
    %vm77 = vcmp.lt.s32.totalorder %v56, 3
    %vm78 = vcmp.lt.s32.totalorder %v56, 4
    %v79 = vsel %vm75, %v59, %v62
    %v80 = vsel %vm78, %v68, 2102212464
    %v81 = vsel %vm77, %v65, %v80
    %v82 = vsel %vm76, %v79, %v81
    %v83 = vsel %vm75, %v62, %v65
    %v84 = vsel %vm78, %v71, 920167782
    %v85 = vsel %vm77, %v68, %v84
    %v86 = vsel %vm76, %v83, %v85
    %v87 = vsel %vm75, %v65, %v68
    %v88 = vsel %vm78, %v74, 1326507024
    %v89 = vsel %vm77, %v71, %v88
    %v90 = vsel %vm76, %v87, %v89
    %v91 = vshll.u32 %v51, 8
    %v92 = vand.u32 %v91, 65535
    %v93 = vshrl.u32 %v91, 16
    %v94 = vand.u32 %v90, 65535
    %v95 = vshrl.u32 %v90, 16
    %v96 = vmul.u32 %v92, %v94
    %v97 = vmul.u32 %v92, %v95
    %v98 = vmul.u32 %v93, %v94
    %v99 = vmul.u32 %v93, %v95
    %v100 = vshll.u32 %v97, 16
    %v101 = vshrl.u32 %v97, 16
    %v102 = vshll.u32 %v98, 16
    %v103 = vshrl.u32 %v98, 16
    %vm104 = vc.u32 %v96, %v100
    %v105 = vsel %vm104, 1, 0
    %v106 = vadd.s32 %v96, %v100
    %v107 = vadd.s32 %v99, %v105
    %vm108 = vc.u32 %v106, %v102
    %v109 = vsel %vm108, 1, 0
    %v110 = vadd.s32 %v106, %v102
    %v111 = vadd.s32 %v107, %v109
    %v112 = vadd.s32 %v111, %v101
    %v113 = vadd.s32 %v112, %v103
    %v114 = vand.u32 %v91, 65535
    %v115 = vshrl.u32 %v91, 16
    %v116 = vand.u32 %v86, 65535
    %v117 = vshrl.u32 %v86, 16
    %v118 = vmul.u32 %v114, %v116
    %v119 = vmul.u32 %v114, %v117
    %v120 = vmul.u32 %v115, %v116
    %v121 = vmul.u32 %v115, %v117
    %v122 = vshll.u32 %v119, 16
    %v123 = vshrl.u32 %v119, 16
    %v124 = vshll.u32 %v120, 16
    %v125 = vshrl.u32 %v120, 16
    %vm126 = vc.u32 %v118, %v122
    %v127 = vsel %vm126, 1, 0
    %v128 = vadd.s32 %v118, %v122
    %v129 = vadd.s32 %v121, %v127
    %vm130 = vc.u32 %v128, %v124
    %v131 = vsel %vm130, 1, 0
    %v132 = vadd.s32 %v128, %v124
    %v133 = vadd.s32 %v129, %v131
    %v134 = vadd.s32 %v133, %v123
    %v135 = vadd.s32 %v134, %v125
    %v136 = vmul.u32 %v91, %v82
    %v137 = vadd.s32 %v113, %v132
    %vm138 = vc.u32 %v113, %v132
    %v139 = vadd.s32 %v135, 1
    %v140 = vsel %vm138, %v139, %v135
    %v141 = vadd.s32 %v136, %v140
    %v142 = vadd.s32 %v141, 536870912
    %v143 = vshrl.u32 %v142, 30
    %v144 = vshll.u32 %v143, 30
    %v145 = vsub.s32 %v141, %v144
    %vm146 = vcmp.lt.s32.totalorder %v145, 0
    %v147 = vsub.s32 0, %v145
    %v148 = vsel %vm146, %v147, %v145
    %v149 = vclz %v148
    %v150 = vsub.s32 %v149, 2
    %vm151 = vcmp.gt.s32.totalorder 0, %v150
    %v152 = vsel %vm151, 0, %v150
    %v153 = vsub.s32 32, %v152
    %v154 = vshll.u32 %v145, %v152
    %v155 = vshrl.u32 %v137, %v153
    %v156 = vor.u32 %v154, %v155
    %v157 = vsub.s32 4294967266, %v152
    %v158 = vadd.s32 %v157, 127
    %v159 = vshll.u32 %v158, 23
    %v160 = vor.u32 4788187, %v159
    %v161 = vand.u32 2147483647, %v160
    %v163 = vcvt.s32.f32 %v156
    %v164 = vmul.f32 %v163, %v161
    %v165 = vxor.u32 %v164, 2147483648
    %v166 = vsel %vm45, %v165, %v164
    %v167 = vsub.s32 4, %v143
    %v168 = vsel %vm45, %v167, %v143
    %v169 = vsel %vm44, %v42, %v166
    %v170 = vsel %vm44, 0, %v168
    %v171 = vmul.f32 %v169, %v169
    %v172 = vmul.f32 %v171, -0.001358992
    %v173 = vadd.f32 %v172, 0.041655596
    %v174 = vmul.f32 %v171, %v173
    %v175 = vadd.f32 %v174, -0.4999988
    %v176 = vmul.f32 %v171, %v175
    %v177 = vadd.f32 1.0, %v176
    %v178 = vmul.f32 %v169, %v169
    %v179 = vmul.f32 %v178, -0.00019511016
    %v180 = vadd.f32 %v179, 0.008332121
    %v181 = vmul.f32 %v178, %v180
    %v182 = vadd.f32 %v181, -0.16666654
    %v183 = vmul.f32 %v178, %v182
    %v184 = vadd.f32 %v183, 1.0
    %v185 = vmul.f32 %v184, %v169
    %vm186 = vweird.f32 %v42
    %v187 = vadd.s32 %v170, 3
    %v188 = vand.u32 %v187, 3
    %vm189 = vcmp.lt.s32.totalorder %v188, 2
    %vm190 = vcmp.eq.s32.totalorder %v188, 0
    %v191 = vxor.u32 %v185, 2147483648
    %v192 = vsel %vm190, %v177, %v191
    %vm193 = vcmp.eq.s32.totalorder %v188, 2
    %v194 = vxor.u32 %v177, 2147483648
    %v195 = vsel %vm193, %v194, %v185
    %v196 = vsel %vm189, %v192, %v195
    %v197 = vsel %vm186, nan, %v196
    %v198 = vmul.f32 %v197, %v197
    %v199 = vsub.f32 %v198, %v40
    %vm200 = vcmask 254976
    %201 = vst.msk [vmem:[#allocation7] sm:$0x3] %vm200, %v199
    // Predicated region
    $region18: #{tpu_custom_call.1} parent=1 // pred_check
      _
    $region19: #{tpu_custom_call.1} parent=1 // pred_check_branch
      %203 = sbr.rel (0) target = $region21
    $region20: #{tpu_custom_call.1} parent=1 // pred_region
      %205 = vsyncadd [#allocation4], 0
      %s207 = sshll.u32 [#allocation7], 4
      %s208 = int_to_ptr.vmem [resolvable:$true] %s207
      %s209 = sshll.u32 %s2, 4
      %s210 = int_to_ptr.hbm [resolvable:$true] %s209
      %212 = dma.vmem_to_hbm [thread:$0]  %s208, 32, %s210, [#allocation4]
    $region21: #{tpu_custom_call.1} parent=1 // pred_fallthru
      _
    // Predicated region
    $region22: #{tpu_custom_call.1} parent=1 // pred_check
      _
    $region23: #{tpu_custom_call.1} parent=1 // pred_check_branch
      %214 = sbr.rel (0) target = $region25
    $region24: #{tpu_custom_call.1} parent=1 // pred_region
      %216 = dma.done [#allocation4], 32
    $region25: #{tpu_custom_call.1} parent=1 // pred_fallthru
      _
    %217 = vsyncpa [#allocation3], 1
    %218 = vsyncpa [#allocation6], 1
    %219 = vsyncpa [#allocation4], 1

</llo_original>
